<compile_context>
chip_gen: v5e
topology: v5e:2x2
jax: 0.10.0
libtpu: 0.0.40
codegen_flags: <defaults>
</compile_context>

<pallas_src>
import numpy as np
import jax
import jax.numpy as jnp
from jax.experimental import pallas as pl
from jax.experimental.pallas import tpu as pltpu

# The torch module references free globals `client_tree_num` / `client_num`;
# pick small deterministic values consistent with the forward pass.
CLIENT_TREE_NUM = 8                      # conv kernel_size == stride  (K)
CLIENT_NUM = 4                           # number of conv output positions (T)
N_CHANNEL = 32                           # conv output channels (C)
N_OUT = 3
BATCH = 2

SEQ_LEN = CLIENT_TREE_NUM * CLIENT_NUM   # L = 32  (input length == conv-matmul rows)
HIDDEN = N_CHANNEL * CLIENT_NUM          # T*C = 128 (flattened conv activation width)
OUT_PAD = 128                            # lane-dense padded output width
BATCH_PAD = 8                            # full sublane tile

# Row layout of the single packed parameter slab (each sub-view 8-row aligned):
ROW_W1 = 0                               # rows [0, 32)   : conv-as-matmul weight (L, H)
ROW_B1 = SEQ_LEN                         # row  32        : conv bias, (t-major, c-minor)
ROW_W2 = SEQ_LEN + 8                     # rows [40, 168) : linear weight (H, 128), lane-padded
ROW_B2 = ROW_W2 + HIDDEN                 # row  168       : linear bias, lane-padded
P_ROWS = ROW_B2 + 8                      # 176 rows total (multiple of 8)


def cnn_kernel(x_ref, p_ref, out_ref):
    # x_ref : (8, 32)    batch-padded flattened input (singleton conv channel squeezed)
    # p_ref : (176, 128) packed parameter slab (static sub-views below are zero-cost)
    # out_ref: (8, 128)  padded output (wrapper slices to [:B, :N_OUT])
    w1 = p_ref[ROW_W1:ROW_W1 + SEQ_LEN, :]     # (32, 128) block-diagonal conv weight
    b1 = p_ref[ROW_B1:ROW_B1 + 1, :]           # (1, 128)  conv bias per (t, c)
    w2 = p_ref[ROW_W2:ROW_W2 + HIDDEN, :]      # (128, 128) linear weight, zero-padded lanes
    b2 = p_ref[ROW_B2:ROW_B2 + 1, :]           # (1, 128)  linear bias, zero-padded lanes

    h = jnp.dot(x_ref[...], w1,
                preferred_element_type=jnp.float32,
                precision=jax.lax.Precision.HIGHEST)
    h = jnp.maximum(h + b1, 0.0)               # conv ReLU; the post-flatten ReLU is a no-op
    out_ref[...] = jnp.dot(h, w2,
                           preferred_element_type=jnp.float32,
                           precision=jax.lax.Precision.HIGHEST) + b2


@jax.jit
def cnn_forward(x_b1l, param_slab):
    B = x_b1l.shape[0]
    # Free reshape (singleton dim) + zero-pad batch to a full 8-row sublane tile;
    # XLA fuses this into one tiny op before the kernel.
    x_pad = jnp.zeros((BATCH_PAD, SEQ_LEN), jnp.float32).at[:B, :].set(
        x_b1l.reshape(B, SEQ_LEN))
    out_pad = pl.pallas_call(
        cnn_kernel,
        out_shape=jax.ShapeDtypeStruct((BATCH_PAD, OUT_PAD), jnp.float32),
        in_specs=[pl.BlockSpec(memory_space=pltpu.MemorySpace.VMEM),
                  pl.BlockSpec(memory_space=pltpu.MemorySpace.VMEM)],
        out_specs=pl.BlockSpec(memory_space=pltpu.MemorySpace.VMEM),
    )(x_pad, param_slab)
    return out_pad[:B, :N_OUT]


def prepare_params(wc, bc, w2, b2):
    """Wrapper-side (glue) re-layout of torch-shaped params into ONE packed slab.

    wc: (C, 1, K) conv weight, bc: (C,), w2: (N_OUT, C*T), b2: (N_OUT,).
    """
    T, K, C = CLIENT_NUM, CLIENT_TREE_NUM, N_CHANNEL
    wc_kc = jnp.transpose(wc[:, 0, :], (1, 0))                               # (K, C)
    # Block-diagonal conv-as-matmul weight: W1[t*K + k, t*C + c] = wc_kc[k, c]
    eye_t = jnp.eye(T, dtype=jnp.float32)
    w1_big = jnp.einsum('tu,kc->tkuc', eye_t, wc_kc).reshape(T * K, T * C)   # (L, H)
    b1_row = jnp.tile(bc, T)                                                 # [t*C + c] = bc[c]
    # Linear weight re-ordered to the (t-major, c-minor) flatten the kernel produces,
    # matching torch's channel-major flatten of the (B, C, T) conv output:
    #   w2_flat[t*C + c, n] = w2[n, c*T + t]
    w2_flat = jnp.transpose(w2.reshape(N_OUT, C, T), (2, 1, 0)).reshape(T * C, N_OUT)

    slab = jnp.zeros((P_ROWS, OUT_PAD), jnp.float32)
    slab = slab.at[ROW_W1:ROW_W1 + SEQ_LEN, :HIDDEN].set(w1_big)
    slab = slab.at[ROW_B1, :HIDDEN].set(b1_row)
    slab = slab.at[ROW_W2:ROW_W2 + HIDDEN, :N_OUT].set(w2_flat)
    slab = slab.at[ROW_B2, :N_OUT].set(b2)
    return slab


def init_params(key):
    """Deterministic init matching the torch parameter shapes:
       conv1d.weight (C, 1, K), conv1d.bias (C,),
       layer_direct.weight (N_OUT, C*T) [kaiming_uniform fan_in/relu], layer_direct.bias (N_OUT,)."""
    k1, k2, k3, k4 = jax.random.split(key, 4)
    K, C, T = CLIENT_TREE_NUM, N_CHANNEL, CLIENT_NUM
    fan_in_conv = 1 * K
    bnd_c = 1.0 / np.sqrt(fan_in_conv)
    wc = jax.random.uniform(k1, (C, 1, K), jnp.float32, -bnd_c, bnd_c)
    bc = jax.random.uniform(k2, (C,), jnp.float32, -bnd_c, bnd_c)
    fan_in_lin = C * T
    bnd_w2 = np.sqrt(2.0) * np.sqrt(3.0 / fan_in_lin)
    w2 = jax.random.uniform(k3, (N_OUT, C * T), jnp.float32, -bnd_w2, bnd_w2)
    bnd_b2 = 1.0 / np.sqrt(fan_in_lin)
    b2 = jax.random.uniform(k4, (N_OUT,), jnp.float32, -bnd_b2, bnd_b2)
    return wc, bc, w2, b2


def reference_forward(x_b1l, wc, bc, w2, b2):
    """Plain-JAX reference following torch semantics exactly (NCL conv, channel-major flatten)."""
    B = x_b1l.shape[0]
    T, K, C = CLIENT_NUM, CLIENT_TREE_NUM, N_CHANNEL
    x_btk = x_b1l[:, 0, :].reshape(B, T, K)
    conv = jnp.einsum('btk,ck->bct', x_btk, wc[:, 0, :]) + bc[None, :, None]   # (B, C, T)
    h = jnp.maximum(conv, 0.0)
    flat = h.reshape(B, C * T)            # channel-major flatten (matches torch .flatten(1))
    flat = jnp.maximum(flat, 0.0)
    return flat @ w2.T + b2[None, :]


if __name__ == "__main__":
    key = jax.random.PRNGKey(0)
    kx, kp = jax.random.split(key)

    # Input in the torch layout (B, 1, L)
    x = jax.random.normal(kx, (BATCH, 1, SEQ_LEN), jnp.float32)
    wc, bc, w2, b2 = init_params(kp)

    param_slab = prepare_params(wc, bc, w2, b2)

    out = cnn_forward(x, param_slab)
    out = jax.block_until_ready(out)

    ref = jax.block_until_ready(reference_forward(x, wc, bc, w2, b2))
    np.testing.assert_allclose(np.asarray(out), np.asarray(ref), rtol=1e-5, atol=1e-5)

    print("KERNEL_OK")
</pallas_src>

<mosaic_0001>
module attributes {stable_mosaic.version = 11 : i64} {
  func.func @cnn_kernel(%arg0: memref<8x32xf32, #tpu.memory_space<vmem>>, %arg1: memref<176x128xf32, #tpu.memory_space<vmem>>, %arg2: memref<8x128xf32, #tpu.memory_space<vmem>>) attributes {dimension_semantics = [], scalar_prefetch = 0 : i64, scratch_operands = 0 : i64, tpu.core_type = #tpu.core_type<tc>} {
    %c0 = arith.constant 0 : index
    %c0_0 = arith.constant 0 : index
    %0 = vector.load %arg1[%c0, %c0_0] : memref<176x128xf32, #tpu.memory_space<vmem>>, vector<32x128xf32>
    %c32 = arith.constant 32 : index
    %c0_1 = arith.constant 0 : index
    %1 = vector.load %arg1[%c32, %c0_1] : memref<176x128xf32, #tpu.memory_space<vmem>>, vector<1x128xf32>
    %c40 = arith.constant 40 : index
    %c0_2 = arith.constant 0 : index
    %2 = vector.load %arg1[%c40, %c0_2] : memref<176x128xf32, #tpu.memory_space<vmem>>, vector<128x128xf32>
    %c168 = arith.constant 168 : index
    %c0_3 = arith.constant 0 : index
    %3 = vector.load %arg1[%c168, %c0_3] : memref<176x128xf32, #tpu.memory_space<vmem>>, vector<1x128xf32>
    %c0_4 = arith.constant 0 : index
    %c0_5 = arith.constant 0 : index
    %4 = vector.load %arg0[%c0_4, %c0_5] : memref<8x32xf32, #tpu.memory_space<vmem>>, vector<8x32xf32>
    %cst = arith.constant dense<0.000000e+00> : vector<8x128xf32>
    %5 = tpu.matmul %4, %0, %cst {dimension_numbers = #tpu.dot_dimension_numbers<[1], [0], [0], [1], [0, 0, 1, 1], [], []>, precision = #tpu.contract_precision<fp32>} : vector<8x32xf32>, vector<32x128xf32>, vector<8x128xf32> -> vector<8x128xf32>
    %6 = vector.broadcast %1 : vector<1x128xf32> to vector<8x128xf32>
    %7 = arith.addf %5, %6 : vector<8x128xf32>
    %cst_6 = arith.constant 0.000000e+00 : f32
    %8 = vector.broadcast %cst_6 : f32 to vector<8x128xf32>
    %9 = arith.maximumf %7, %8 : vector<8x128xf32>
    %cst_7 = arith.constant dense<0.000000e+00> : vector<8x128xf32>
    %10 = tpu.matmul %9, %2, %cst_7 {dimension_numbers = #tpu.dot_dimension_numbers<[1], [0], [0], [1], [0, 0, 1, 1], [], []>, precision = #tpu.contract_precision<fp32>} : vector<8x128xf32>, vector<128x128xf32>, vector<8x128xf32> -> vector<8x128xf32>
    %11 = vector.broadcast %3 : vector<1x128xf32> to vector<8x128xf32>
    %12 = arith.addf %10, %11 : vector<8x128xf32>
    %c0_8 = arith.constant 0 : index
    %c0_9 = arith.constant 0 : index
    %13 = vector.load %arg2[%c0_8, %c0_9] : memref<8x128xf32, #tpu.memory_space<vmem>>, vector<8x128xf32>
    tpu.vector_store %arg2[%c0_8, %c0_9], %12 {strides = array<i32>} : memref<8x128xf32, #tpu.memory_space<vmem>>, vector<8x128xf32>,
    return
  }
}

</mosaic_0001>

<llo_original>
// kernel: cnn_forward.1
$region0: #{cnn_forward.1}
  #allocation0 [shape = 'u32[]', space=smem, size = 0x4, offset = 0x4, fixed_abs, tag = 'smem constant byte address 0x4 - core index']
  #allocation1 [shape = 'u32[72,128]{1,0:T(1,128)}', space=vmem, size = 0x9000, scoped, tag = 'internal scratch']
  %s0 = inlined_call_operand.vmem [shape: f32[8,32], index: 0, kind: input, shape index: {}]
  %s1 = inlined_call_operand.hbm [shape: f32[176,128], index: 1, kind: input, shape index: {}]
  %s2 = inlined_call_operand.vmem [shape: f32[8,128], index: 2, kind: output, shape index: {}]
  %s3 = sld [smem:[#allocation0]]
  $region22: #{cnn_forward.1} parent=0
    _
  %s5 = ssub.s32 1, %s3
  %s6 = scalar_select 0, %s5, %s3
  $region1: #{cnn_forward.1} parent=0
    #allocation2 [shape = 'u8[90112]{0}', space=vmem, size = 0x16000, scoped, tag = 'input window, operand 1, single buffered']
    #allocation3 [shape = 's32[1]{0}', space=sflag, size = 0x4, scoped, tag = 'scoped memory for cnn_forward.1']
    %7 = vsyncpa [#allocation3], 0
    // Predicated region
    $region2: #{cnn_forward.1} parent=1 // pred_check
      _
    $region3: #{cnn_forward.1} parent=1 // pred_check_branch
      %9 = sbr.rel (0) target = $region5
    $region4: #{cnn_forward.1} parent=1 // pred_region
      _
    $region5: #{cnn_forward.1} parent=1 // pred_fallthru
      _
    // Predicated region
    $region6: #{cnn_forward.1} parent=1 // pred_check
      _
    $region7: #{cnn_forward.1} parent=1 // pred_check_branch
      %11 = sbr.rel (0) target = $region9
    $region8: #{cnn_forward.1} parent=1 // pred_region
      %13 = vsyncadd [#allocation3], 0
      %s14 = sshll.u32 %s1, 4
      %s15 = int_to_ptr.hbm [resolvable:$true] %s14
      %s16 = sshll.u32 [#allocation2], 4
      %s17 = int_to_ptr.vmem [resolvable:$true] %s16
      %22 = dma.hbm_to_vmem [thread:$0]  %s15, 2816, %s17, [#allocation3], 128, 128, 8
    $region9: #{cnn_forward.1} parent=1 // pred_fallthru
      _
    // Predicated region
    $region10: #{cnn_forward.1} parent=1 // pred_check
      _
    $region11: #{cnn_forward.1} parent=1 // pred_check_branch
      %24 = sbr.rel (0) target = $region13
    $region12: #{cnn_forward.1} parent=1 // pred_region
      %26 = dma.done [#allocation3], 2816
    $region13: #{cnn_forward.1} parent=1 // pred_fallthru
      _
    %v27 = vld [vmem:[#allocation2] sm:$0xff]
    %v28 = vld [vmem:[#allocation2 + $0x8] sm:$0xff]
    %v29 = vld [vmem:[#allocation2 + $0x10] sm:$0xff]
    %v30 = vld [vmem:[#allocation2 + $0x18] sm:$0xff]
    %v31 = vld [vmem:[#allocation2 + $0x20] sm:$0x1]
    %v32 = vld [vmem:[#allocation2 + $0x28] sm:$0xff]
    %v33 = vld [vmem:[#allocation2 + $0x30] sm:$0xff]
    %v34 = vld [vmem:[#allocation2 + $0x38] sm:$0xff]
    %v35 = vld [vmem:[#allocation2 + $0x40] sm:$0xff]
    %v36 = vld [vmem:[#allocation2 + $0x48] sm:$0xff]
    %v37 = vld [vmem:[#allocation2 + $0x50] sm:$0xff]
    %v38 = vld [vmem:[#allocation2 + $0x58] sm:$0xff]
    %v39 = vld [vmem:[#allocation2 + $0x60] sm:$0xff]
    %v40 = vld [vmem:[#allocation2 + $0x68] sm:$0xff]
    %v41 = vld [vmem:[#allocation2 + $0x70] sm:$0xff]
    %v42 = vld [vmem:[#allocation2 + $0x78] sm:$0xff]
    %v43 = vld [vmem:[#allocation2 + $0x80] sm:$0xff]
    %v44 = vld [vmem:[#allocation2 + $0x88] sm:$0xff]
    %v45 = vld [vmem:[#allocation2 + $0x90] sm:$0xff]
    %v46 = vld [vmem:[#allocation2 + $0x98] sm:$0xff]
    %v47 = vld [vmem:[#allocation2 + $0xa0] sm:$0xff]
    %v48 = vld [vmem:[#allocation2 + $0xa8] sm:$0x1]
    %v49 = vld [vmem:[%s0] sm:$0xff]
    %v50 = vperm.slane %v31, 0
    %vm51 = vcmask 261120
    %v53 = vsel %vm51, %v49, 0
    %55 = vmatpush.msra.mxu0 0.0
    %56 = vmatpush.msra.mxu0 0.0
    %57 = vmatpush.msra.mxu0 0.0
    %58 = vmatpush.msra.mxu0 0.0
    %59 = vmatpush.msra.mxu0 0.0
    %60 = vmatpush.msra.mxu0 0.0
    %61 = vmatpush.msra.mxu0 0.0
    %62 = vmatpush.msra.mxu0 0.0
    %63 = vmatpush.msra.mxu0 0.0
    %64 = vmatpush.msra.mxu0 0.0
    %65 = vmatpush.msra.mxu0 0.0
    %66 = vmatpush.msra.mxu0 0.0
    %v67 = vand.u32 %v30, 4294901760
    %68 = vmatpush.msra.mxu0 %v67
    %v69 = vand.u32 %v29, 4294901760
    %70 = vmatpush.msra.mxu0 %v69
    %v71 = vand.u32 %v28, 4294901760
    %72 = vmatpush.msra.mxu0 %v71
    %v73 = vand.u32 %v27, 4294901760
    %74 = vmatpush.msra.mxu0 %v73
    %v75 = vand.u32 %v53, 4294901760
    %v76 = vsub.f32 %v53, %v75
    %v77 = vand.u32 %v76, 4294901760
    %v78 = vsub.f32 %v76, %v77
    %v79 = vand.u32 %v78, 4294901760
    %80 = vmatmul.f32.gmra.mxu0 %v79
    %v81 = vpop.f32.mrf.mxu0
    %v82 = vadd.f32 %v50, %v81
    %83 = vdwg.mxu0
    %84 = vmatpush.msra.mxu0 0.0
    %85 = vmatpush.msra.mxu0 0.0
    %86 = vmatpush.msra.mxu0 0.0
    %87 = vmatpush.msra.mxu0 0.0
    %88 = vmatpush.msra.mxu0 0.0
    %89 = vmatpush.msra.mxu0 0.0
    %90 = vmatpush.msra.mxu0 0.0
    %91 = vmatpush.msra.mxu0 0.0
    %92 = vmatpush.msra.mxu0 0.0
    %93 = vmatpush.msra.mxu0 0.0
    %94 = vmatpush.msra.mxu0 0.0
    %95 = vmatpush.msra.mxu0 0.0
    %v96 = vand.u32 %v30, 4294901760
    %v97 = vsub.f32 %v30, %v96
    %v98 = vand.u32 %v97, 4294901760
    %v99 = vsub.f32 %v97, %v98
    %v100 = vand.u32 %v99, 4294901760
    %101 = vmatpush.msra.mxu0 %v100
    %v102 = vand.u32 %v29, 4294901760
    %v103 = vsub.f32 %v29, %v102
    %v104 = vand.u32 %v103, 4294901760
    %v105 = vsub.f32 %v103, %v104
    %v106 = vand.u32 %v105, 4294901760
    %107 = vmatpush.msra.mxu0 %v106
    %v108 = vand.u32 %v28, 4294901760
    %v109 = vsub.f32 %v28, %v108
    %v110 = vand.u32 %v109, 4294901760
    %v111 = vsub.f32 %v109, %v110
    %v112 = vand.u32 %v111, 4294901760
    %113 = vmatpush.msra.mxu0 %v112
    %v114 = vand.u32 %v27, 4294901760
    %v115 = vsub.f32 %v27, %v114
    %v116 = vand.u32 %v115, 4294901760
    %v117 = vsub.f32 %v115, %v116
    %v118 = vand.u32 %v117, 4294901760
    %119 = vmatpush.msra.mxu0 %v118
    %v120 = vand.u32 %v53, 4294901760
    %121 = vmatmul.f32.gmra.mxu0 %v120
    %v122 = vpop.f32.mrf.mxu0
    %v123 = vadd.f32 %v82, %v122
    %124 = vdwg.mxu0
    %125 = vmatpush.msra.mxu0 0.0
    %126 = vmatpush.msra.mxu0 0.0
    %127 = vmatpush.msra.mxu0 0.0
    %128 = vmatpush.msra.mxu0 0.0
    %129 = vmatpush.msra.mxu0 0.0
    %130 = vmatpush.msra.mxu0 0.0
    %131 = vmatpush.msra.mxu0 0.0
    %132 = vmatpush.msra.mxu0 0.0
    %133 = vmatpush.msra.mxu0 0.0
    %134 = vmatpush.msra.mxu0 0.0
    %135 = vmatpush.msra.mxu0 0.0
    %136 = vmatpush.msra.mxu0 0.0
    %v137 = vand.u32 %v30, 4294901760
    %v138 = vsub.f32 %v30, %v137
    %139 = vmatpush.msra.mxu0 %v138
    %v140 = vand.u32 %v29, 4294901760
    %v141 = vsub.f32 %v29, %v140
    %142 = vmatpush.msra.mxu0 %v141
    %v143 = vand.u32 %v28, 4294901760
    %v144 = vsub.f32 %v28, %v143
    %145 = vmatpush.msra.mxu0 %v144
    %v146 = vand.u32 %v27, 4294901760
    %v147 = vsub.f32 %v27, %v146
    %148 = vmatpush.msra.mxu0 %v147
    %v149 = vand.u32 %v53, 4294901760
    %v150 = vsub.f32 %v53, %v149
    %151 = vmatmul.f32.gmra.mxu0 %v150
    %v152 = vpop.f32.mrf.mxu0
    %v153 = vadd.f32 %v123, %v152
    %154 = vdwg.mxu0
    %155 = vmatpush.msra.mxu0 0.0
    %156 = vmatpush.msra.mxu0 0.0
    %157 = vmatpush.msra.mxu0 0.0
    %158 = vmatpush.msra.mxu0 0.0
    %159 = vmatpush.msra.mxu0 0.0
    %160 = vmatpush.msra.mxu0 0.0
    %161 = vmatpush.msra.mxu0 0.0
    %162 = vmatpush.msra.mxu0 0.0
    %163 = vmatpush.msra.mxu0 0.0
    %164 = vmatpush.msra.mxu0 0.0
    %165 = vmatpush.msra.mxu0 0.0
    %166 = vmatpush.msra.mxu0 0.0
    %v167 = vand.u32 %v30, 4294901760
    %168 = vmatpush.msra.mxu0 %v167
    %v169 = vand.u32 %v29, 4294901760
    %170 = vmatpush.msra.mxu0 %v169
    %v171 = vand.u32 %v28, 4294901760
    %172 = vmatpush.msra.mxu0 %v171
    %v173 = vand.u32 %v27, 4294901760
    %174 = vmatpush.msra.mxu0 %v173
    %v175 = vand.u32 %v53, 4294901760
    %v176 = vsub.f32 %v53, %v175
    %v177 = vand.u32 %v176, 4294901760
    %178 = vmatmul.f32.gmra.mxu0 %v177
    %v179 = vpop.f32.mrf.mxu0
    %v180 = vadd.f32 %v153, %v179
    %181 = vdwg.mxu0
    %182 = vmatpush.msra.mxu0 0.0
    %183 = vmatpush.msra.mxu0 0.0
    %184 = vmatpush.msra.mxu0 0.0
    %185 = vmatpush.msra.mxu0 0.0
    %186 = vmatpush.msra.mxu0 0.0
    %187 = vmatpush.msra.mxu0 0.0
    %188 = vmatpush.msra.mxu0 0.0
    %189 = vmatpush.msra.mxu0 0.0
    %190 = vmatpush.msra.mxu0 0.0
    %191 = vmatpush.msra.mxu0 0.0
    %192 = vmatpush.msra.mxu0 0.0
    %193 = vmatpush.msra.mxu0 0.0
    %v194 = vand.u32 %v30, 4294901760
    %v195 = vsub.f32 %v30, %v194
    %v196 = vand.u32 %v195, 4294901760
    %197 = vmatpush.msra.mxu0 %v196
    %v198 = vand.u32 %v29, 4294901760
    %v199 = vsub.f32 %v29, %v198
    %v200 = vand.u32 %v199, 4294901760
    %201 = vmatpush.msra.mxu0 %v200
    %v202 = vand.u32 %v28, 4294901760
    %v203 = vsub.f32 %v28, %v202
    %v204 = vand.u32 %v203, 4294901760
    %205 = vmatpush.msra.mxu0 %v204
    %v206 = vand.u32 %v27, 4294901760
    %v207 = vsub.f32 %v27, %v206
    %v208 = vand.u32 %v207, 4294901760
    %209 = vmatpush.msra.mxu0 %v208
    %v210 = vand.u32 %v53, 4294901760
    %211 = vmatmul.f32.gmra.mxu0 %v210
    %v212 = vpop.f32.mrf.mxu0
    %v213 = vadd.f32 %v180, %v212
    %214 = vdwg.mxu0
    %215 = vmatpush.msra.mxu0 0.0
    %216 = vmatpush.msra.mxu0 0.0
    %217 = vmatpush.msra.mxu0 0.0
    %218 = vmatpush.msra.mxu0 0.0
    %219 = vmatpush.msra.mxu0 0.0
    %220 = vmatpush.msra.mxu0 0.0
    %221 = vmatpush.msra.mxu0 0.0
    %222 = vmatpush.msra.mxu0 0.0
    %223 = vmatpush.msra.mxu0 0.0
    %224 = vmatpush.msra.mxu0 0.0
    %225 = vmatpush.msra.mxu0 0.0
    %226 = vmatpush.msra.mxu0 0.0
    %v227 = vand.u32 %v30, 4294901760
    %228 = vmatpush.msra.mxu0 %v227
    %v229 = vand.u32 %v29, 4294901760
    %230 = vmatpush.msra.mxu0 %v229
    %v231 = vand.u32 %v28, 4294901760
    %232 = vmatpush.msra.mxu0 %v231
    %v233 = vand.u32 %v27, 4294901760
    %234 = vmatpush.msra.mxu0 %v233
    %v235 = vand.u32 %v53, 4294901760
    %236 = vmatmul.f32.gmra.mxu0 %v235
    %v237 = vpop.f32.mrf.mxu0
    %v238 = vadd.f32 %v213, %v237
    %239 = vdwg.mxu0
    %v240 = vmax.f32 %v238, 0.0
    %v241 = vperm.slane %v48, 0
    %v242 = vand.u32 %v47, 4294901760
    %243 = vmatpush.msra.mxu0 %v242
    %v244 = vand.u32 %v46, 4294901760
    %245 = vmatpush.msra.mxu0 %v244
    %v246 = vand.u32 %v45, 4294901760
    %247 = vmatpush.msra.mxu0 %v246
    %v248 = vand.u32 %v44, 4294901760
    %249 = vmatpush.msra.mxu0 %v248
    %v250 = vand.u32 %v43, 4294901760
    %251 = vmatpush.msra.mxu0 %v250
    %v252 = vand.u32 %v42, 4294901760
    %253 = vmatpush.msra.mxu0 %v252
    %v254 = vand.u32 %v41, 4294901760
    %255 = vmatpush.msra.mxu0 %v254
    %v256 = vand.u32 %v40, 4294901760
    %257 = vmatpush.msra.mxu0 %v256
    %v258 = vand.u32 %v39, 4294901760
    %259 = vmatpush.msra.mxu0 %v258
    %v260 = vand.u32 %v38, 4294901760
    %261 = vmatpush.msra.mxu0 %v260
    %v262 = vand.u32 %v37, 4294901760
    %263 = vmatpush.msra.mxu0 %v262
    %v264 = vand.u32 %v36, 4294901760
    %265 = vmatpush.msra.mxu0 %v264
    %v266 = vand.u32 %v35, 4294901760
    %267 = vmatpush.msra.mxu0 %v266
    %v268 = vand.u32 %v34, 4294901760
    %269 = vmatpush.msra.mxu0 %v268
    %v270 = vand.u32 %v33, 4294901760
    %271 = vmatpush.msra.mxu0 %v270
    %v272 = vand.u32 %v32, 4294901760
    %273 = vmatpush.msra.mxu0 %v272
    %v274 = vand.u32 %v240, 4294901760
    %v275 = vsub.f32 %v240, %v274
    %v276 = vand.u32 %v275, 4294901760
    %v277 = vsub.f32 %v275, %v276
    %v278 = vand.u32 %v277, 4294901760
    %279 = vmatmul.f32.gmra.mxu0 %v278
    %v280 = vpop.f32.mrf.mxu0
    %v281 = vadd.f32 %v241, %v280
    %282 = vdwg.mxu0
    %v283 = vand.u32 %v47, 4294901760
    %v284 = vsub.f32 %v47, %v283
    %v285 = vand.u32 %v284, 4294901760
    %v286 = vsub.f32 %v284, %v285
    %v287 = vand.u32 %v286, 4294901760
    %288 = vmatpush.msra.mxu0 %v287
    %v289 = vand.u32 %v46, 4294901760
    %v290 = vsub.f32 %v46, %v289
    %v291 = vand.u32 %v290, 4294901760
    %v292 = vsub.f32 %v290, %v291
    %v293 = vand.u32 %v292, 4294901760
    %294 = vmatpush.msra.mxu0 %v293
    %v295 = vand.u32 %v45, 4294901760
    %v296 = vsub.f32 %v45, %v295
    %v297 = vand.u32 %v296, 4294901760
    %v298 = vsub.f32 %v296, %v297
    %v299 = vand.u32 %v298, 4294901760
    %300 = vmatpush.msra.mxu0 %v299
    %v301 = vand.u32 %v44, 4294901760
    %v302 = vsub.f32 %v44, %v301
    %v303 = vand.u32 %v302, 4294901760
    %v304 = vsub.f32 %v302, %v303
    %v305 = vand.u32 %v304, 4294901760
    %306 = vmatpush.msra.mxu0 %v305
    %v307 = vand.u32 %v43, 4294901760
    %v308 = vsub.f32 %v43, %v307
    %v309 = vand.u32 %v308, 4294901760
    %v310 = vsub.f32 %v308, %v309
    %v311 = vand.u32 %v310, 4294901760
    %312 = vmatpush.msra.mxu0 %v311
    %v313 = vand.u32 %v42, 4294901760
    %v314 = vsub.f32 %v42, %v313
    %v315 = vand.u32 %v314, 4294901760
    %v316 = vsub.f32 %v314, %v315
    %v317 = vand.u32 %v316, 4294901760
    %318 = vmatpush.msra.mxu0 %v317
    %v319 = vand.u32 %v41, 4294901760
    %v320 = vsub.f32 %v41, %v319
    %v321 = vand.u32 %v320, 4294901760
    %v322 = vsub.f32 %v320, %v321
    %v323 = vand.u32 %v322, 4294901760
    %324 = vmatpush.msra.mxu0 %v323
    %v325 = vand.u32 %v40, 4294901760
    %v326 = vsub.f32 %v40, %v325
    %v327 = vand.u32 %v326, 4294901760
    %v328 = vsub.f32 %v326, %v327
    %v329 = vand.u32 %v328, 4294901760
    %330 = vmatpush.msra.mxu0 %v329
    %v331 = vand.u32 %v39, 4294901760
    %v332 = vsub.f32 %v39, %v331
    %v333 = vand.u32 %v332, 4294901760
    %v334 = vsub.f32 %v332, %v333
    %v335 = vand.u32 %v334, 4294901760
    %336 = vmatpush.msra.mxu0 %v335
    %v337 = vand.u32 %v38, 4294901760
    %v338 = vsub.f32 %v38, %v337
    %v339 = vand.u32 %v338, 4294901760
    %v340 = vsub.f32 %v338, %v339
    %v341 = vand.u32 %v340, 4294901760
    %342 = vmatpush.msra.mxu0 %v341
    %v343 = vand.u32 %v37, 4294901760
    %v344 = vsub.f32 %v37, %v343
    %v345 = vand.u32 %v344, 4294901760
    %v346 = vsub.f32 %v344, %v345
    %v347 = vand.u32 %v346, 4294901760
    %348 = vmatpush.msra.mxu0 %v347
    %v349 = vand.u32 %v36, 4294901760
    %v350 = vsub.f32 %v36, %v349
    %v351 = vand.u32 %v350, 4294901760
    %v352 = vsub.f32 %v350, %v351
    %v353 = vand.u32 %v352, 4294901760
    %354 = vmatpush.msra.mxu0 %v353
    %v355 = vand.u32 %v35, 4294901760
    %v356 = vsub.f32 %v35, %v355
    %v357 = vand.u32 %v356, 4294901760
    %v358 = vsub.f32 %v356, %v357
    %v359 = vand.u32 %v358, 4294901760
    %360 = vmatpush.msra.mxu0 %v359
    %v361 = vand.u32 %v34, 4294901760
    %v362 = vsub.f32 %v34, %v361
    %v363 = vand.u32 %v362, 4294901760
    %v364 = vsub.f32 %v362, %v363
    %v365 = vand.u32 %v364, 4294901760
    %366 = vmatpush.msra.mxu0 %v365
    %v367 = vand.u32 %v33, 4294901760
    %v368 = vsub.f32 %v33, %v367
    %v369 = vand.u32 %v368, 4294901760
    %v370 = vsub.f32 %v368, %v369
    %v371 = vand.u32 %v370, 4294901760
    %372 = vmatpush.msra.mxu0 %v371
    %v373 = vand.u32 %v32, 4294901760
    %v374 = vsub.f32 %v32, %v373
    %v375 = vand.u32 %v374, 4294901760
    %v376 = vsub.f32 %v374, %v375
    %v377 = vand.u32 %v376, 4294901760
    %378 = vmatpush.msra.mxu0 %v377
    %v379 = vand.u32 %v240, 4294901760
    %380 = vmatmul.f32.gmra.mxu0 %v379
    %v381 = vpop.f32.mrf.mxu0
    %v382 = vadd.f32 %v281, %v381
    %383 = vdwg.mxu0
    %v384 = vand.u32 %v47, 4294901760
    %v385 = vsub.f32 %v47, %v384
    %386 = vmatpush.msra.mxu0 %v385
    %v387 = vand.u32 %v46, 4294901760
    %v388 = vsub.f32 %v46, %v387
    %389 = vmatpush.msra.mxu0 %v388
    %v390 = vand.u32 %v45, 4294901760
    %v391 = vsub.f32 %v45, %v390
    %392 = vmatpush.msra.mxu0 %v391
    %v393 = vand.u32 %v44, 4294901760
    %v394 = vsub.f32 %v44, %v393
    %395 = vmatpush.msra.mxu0 %v394
    %v396 = vand.u32 %v43, 4294901760
    %v397 = vsub.f32 %v43, %v396
    %398 = vmatpush.msra.mxu0 %v397
    %v399 = vand.u32 %v42, 4294901760
    %v400 = vsub.f32 %v42, %v399
    %401 = vmatpush.msra.mxu0 %v400
    %v402 = vand.u32 %v41, 4294901760
    %v403 = vsub.f32 %v41, %v402
    %404 = vmatpush.msra.mxu0 %v403
    %v405 = vand.u32 %v40, 4294901760
    %v406 = vsub.f32 %v40, %v405
    %407 = vmatpush.msra.mxu0 %v406
    %v408 = vand.u32 %v39, 4294901760
    %v409 = vsub.f32 %v39, %v408
    %410 = vmatpush.msra.mxu0 %v409
    %v411 = vand.u32 %v38, 4294901760
    %v412 = vsub.f32 %v38, %v411
    %413 = vmatpush.msra.mxu0 %v412
    %v414 = vand.u32 %v37, 4294901760
    %v415 = vsub.f32 %v37, %v414
    %416 = vmatpush.msra.mxu0 %v415
    %v417 = vand.u32 %v36, 4294901760
    %v418 = vsub.f32 %v36, %v417
    %419 = vmatpush.msra.mxu0 %v418
    %v420 = vand.u32 %v35, 4294901760
    %v421 = vsub.f32 %v35, %v420
    %422 = vmatpush.msra.mxu0 %v421
    %v423 = vand.u32 %v34, 4294901760
    %v424 = vsub.f32 %v34, %v423
    %425 = vmatpush.msra.mxu0 %v424
    %v426 = vand.u32 %v33, 4294901760
    %v427 = vsub.f32 %v33, %v426
    %428 = vmatpush.msra.mxu0 %v427
    %v429 = vand.u32 %v32, 4294901760
    %v430 = vsub.f32 %v32, %v429
    %431 = vmatpush.msra.mxu0 %v430
    %v432 = vand.u32 %v240, 4294901760
    %v433 = vsub.f32 %v240, %v432
    %434 = vmatmul.f32.gmra.mxu0 %v433
    %v435 = vpop.f32.mrf.mxu0
    %v436 = vadd.f32 %v382, %v435
    %437 = vdwg.mxu0
    %v438 = vand.u32 %v47, 4294901760
    %439 = vmatpush.msra.mxu0 %v438
    %v440 = vand.u32 %v46, 4294901760
    %441 = vmatpush.msra.mxu0 %v440
    %v442 = vand.u32 %v45, 4294901760
    %443 = vmatpush.msra.mxu0 %v442
    %v444 = vand.u32 %v44, 4294901760
    %445 = vmatpush.msra.mxu0 %v444
    %v446 = vand.u32 %v43, 4294901760
    %447 = vmatpush.msra.mxu0 %v446
    %v448 = vand.u32 %v42, 4294901760
    %449 = vmatpush.msra.mxu0 %v448
    %v450 = vand.u32 %v41, 4294901760
    %451 = vmatpush.msra.mxu0 %v450
    %v452 = vand.u32 %v40, 4294901760
    %453 = vmatpush.msra.mxu0 %v452
    %v454 = vand.u32 %v39, 4294901760
    %455 = vmatpush.msra.mxu0 %v454
    %v456 = vand.u32 %v38, 4294901760
    %457 = vmatpush.msra.mxu0 %v456
    %v458 = vand.u32 %v37, 4294901760
    %459 = vmatpush.msra.mxu0 %v458
    %v460 = vand.u32 %v36, 4294901760
    %461 = vmatpush.msra.mxu0 %v460
    %v462 = vand.u32 %v35, 4294901760
    %463 = vmatpush.msra.mxu0 %v462
    %v464 = vand.u32 %v34, 4294901760
    %465 = vmatpush.msra.mxu0 %v464
    %v466 = vand.u32 %v33, 4294901760
    %467 = vmatpush.msra.mxu0 %v466
    %v468 = vand.u32 %v32, 4294901760
    %469 = vmatpush.msra.mxu0 %v468
    %v470 = vand.u32 %v240, 4294901760
    %v471 = vsub.f32 %v240, %v470
    %v472 = vand.u32 %v471, 4294901760
    %473 = vmatmul.f32.gmra.mxu0 %v472
    %v474 = vpop.f32.mrf.mxu0
    %v475 = vadd.f32 %v436, %v474
    %476 = vdwg.mxu0
    %v477 = vand.u32 %v47, 4294901760
    %v478 = vsub.f32 %v47, %v477
    %v479 = vand.u32 %v478, 4294901760
    %480 = vmatpush.msra.mxu0 %v479
    %v481 = vand.u32 %v46, 4294901760
    %v482 = vsub.f32 %v46, %v481
    %v483 = vand.u32 %v482, 4294901760
    %484 = vmatpush.msra.mxu0 %v483
    %v485 = vand.u32 %v45, 4294901760
    %v486 = vsub.f32 %v45, %v485
    %v487 = vand.u32 %v486, 4294901760
    %488 = vmatpush.msra.mxu0 %v487
    %v489 = vand.u32 %v44, 4294901760
    %v490 = vsub.f32 %v44, %v489
    %v491 = vand.u32 %v490, 4294901760
    %492 = vmatpush.msra.mxu0 %v491
    %v493 = vand.u32 %v43, 4294901760
    %v494 = vsub.f32 %v43, %v493
    %v495 = vand.u32 %v494, 4294901760
    %496 = vmatpush.msra.mxu0 %v495
    %v497 = vand.u32 %v42, 4294901760
    %v498 = vsub.f32 %v42, %v497
    %v499 = vand.u32 %v498, 4294901760
    %500 = vmatpush.msra.mxu0 %v499
    %v501 = vand.u32 %v41, 4294901760
    %v502 = vsub.f32 %v41, %v501
    %v503 = vand.u32 %v502, 4294901760
    %504 = vmatpush.msra.mxu0 %v503
    %v505 = vand.u32 %v40, 4294901760
    %v506 = vsub.f32 %v40, %v505
    %v507 = vand.u32 %v506, 4294901760
    %508 = vmatpush.msra.mxu0 %v507
    %v509 = vand.u32 %v39, 4294901760
    %v510 = vsub.f32 %v39, %v509
    %v511 = vand.u32 %v510, 4294901760
    %512 = vmatpush.msra.mxu0 %v511
    %v513 = vand.u32 %v38, 4294901760
    %v514 = vsub.f32 %v38, %v513
    %v515 = vand.u32 %v514, 4294901760
    %516 = vmatpush.msra.mxu0 %v515
    %v517 = vand.u32 %v37, 4294901760
    %v518 = vsub.f32 %v37, %v517
    %v519 = vand.u32 %v518, 4294901760
    %520 = vmatpush.msra.mxu0 %v519
    %v521 = vand.u32 %v36, 4294901760
    %v522 = vsub.f32 %v36, %v521
    %v523 = vand.u32 %v522, 4294901760
    %524 = vmatpush.msra.mxu0 %v523
    %v525 = vand.u32 %v35, 4294901760
    %v526 = vsub.f32 %v35, %v525
    %v527 = vand.u32 %v526, 4294901760
    %528 = vmatpush.msra.mxu0 %v527
    %v529 = vand.u32 %v34, 4294901760
    %v530 = vsub.f32 %v34, %v529
    %v531 = vand.u32 %v530, 4294901760
    %532 = vmatpush.msra.mxu0 %v531
    %v533 = vand.u32 %v33, 4294901760
    %v534 = vsub.f32 %v33, %v533
    %v535 = vand.u32 %v534, 4294901760
    %536 = vmatpush.msra.mxu0 %v535
    %v537 = vand.u32 %v32, 4294901760
    %v538 = vsub.f32 %v32, %v537
    %v539 = vand.u32 %v538, 4294901760
    %540 = vmatpush.msra.mxu0 %v539
    %v541 = vand.u32 %v240, 4294901760
    %542 = vmatmul.f32.gmra.mxu0 %v541
    %v543 = vpop.f32.mrf.mxu0
    %v544 = vadd.f32 %v475, %v543
    %545 = vdwg.mxu0
    %v546 = vand.u32 %v47, 4294901760
    %547 = vmatpush.msra.mxu0 %v546
    %v548 = vand.u32 %v46, 4294901760
    %549 = vmatpush.msra.mxu0 %v548
    %v550 = vand.u32 %v45, 4294901760
    %551 = vmatpush.msra.mxu0 %v550
    %v552 = vand.u32 %v44, 4294901760
    %553 = vmatpush.msra.mxu0 %v552
    %v554 = vand.u32 %v43, 4294901760
    %555 = vmatpush.msra.mxu0 %v554
    %v556 = vand.u32 %v42, 4294901760
    %557 = vmatpush.msra.mxu0 %v556
    %v558 = vand.u32 %v41, 4294901760
    %559 = vmatpush.msra.mxu0 %v558
    %v560 = vand.u32 %v40, 4294901760
    %561 = vmatpush.msra.mxu0 %v560
    %v562 = vand.u32 %v39, 4294901760
    %563 = vmatpush.msra.mxu0 %v562
    %v564 = vand.u32 %v38, 4294901760
    %565 = vmatpush.msra.mxu0 %v564
    %v566 = vand.u32 %v37, 4294901760
    %567 = vmatpush.msra.mxu0 %v566
    %v568 = vand.u32 %v36, 4294901760
    %569 = vmatpush.msra.mxu0 %v568
    %v570 = vand.u32 %v35, 4294901760
    %571 = vmatpush.msra.mxu0 %v570
    %v572 = vand.u32 %v34, 4294901760
    %573 = vmatpush.msra.mxu0 %v572
    %v574 = vand.u32 %v33, 4294901760
    %575 = vmatpush.msra.mxu0 %v574
    %v576 = vand.u32 %v32, 4294901760
    %577 = vmatpush.msra.mxu0 %v576
    %v578 = vand.u32 %v240, 4294901760
    %579 = vmatmul.f32.gmra.mxu0 %v578
    %v580 = vpop.f32.mrf.mxu0
    %v581 = vadd.f32 %v544, %v580
    %582 = vdwg.mxu0
    %583 = vst [vmem:[%s2] sm:$0xff] %v581
    // Predicated region
    $region14: #{cnn_forward.1} parent=1 // pred_check
      _
    $region15: #{cnn_forward.1} parent=1 // pred_check_branch
      %585 = sbr.rel (0) target = $region17
    $region16: #{cnn_forward.1} parent=1 // pred_region
      _
    $region17: #{cnn_forward.1} parent=1 // pred_fallthru
      _
    // Predicated region
    $region18: #{cnn_forward.1} parent=1 // pred_check
      _
    $region19: #{cnn_forward.1} parent=1 // pred_check_branch
      %587 = sbr.rel (0) target = $region21
    $region20: #{cnn_forward.1} parent=1 // pred_region
      _
    $region21: #{cnn_forward.1} parent=1 // pred_fallthru
      _
    %588 = vsyncpa [#allocation3], 1

</llo_original>
